<compile_context>
chip_gen: v5e
topology: v5e:2x2
jax: 0.10.0
libtpu: 0.0.40
codegen_flags: <defaults>
</compile_context>

<pallas_src>
import functools

import jax
import jax.numpy as jnp
from jax import lax
from jax.experimental import pallas as pl
from jax.experimental.pallas import tpu as pltpu

LANE = 128
ACC_ROWS = 24  # 3 statistics (sum_y, sum_y*lab, sum_lab) x 8 sublanes


def _default_block_rows():
    """Chip-aware default row-block size (user-overridable)."""
    try:
        kind = str(jax.devices()[0].device_kind).lower()
    except Exception:
        kind = ""
    if "v7" in kind or "7x" in kind:
        return 8192   # 16 MiB of input double-buffers; fits v7x 32 MiB scoped default.
    return 4096       # 8 MiB; fits v5e's 16 MiB scoped default (and v6e's 32 MiB).


def _sublane_multiple(dtype):
    """Minimum sublane tile for a dtype: f32->8, bf16->16, int8/bool->32."""
    itemsize = jnp.dtype(dtype).itemsize
    return 8 * max(1, 4 // itemsize)


def _aux_loss_kernel(y_ref, l_ref, out_ref, acc_ref, *, br, bpc, num_blocks,
                     valid_last_rows, needs_row_mask, needs_block_mask, use_sublane):
    """Grid = (num_splits, blocks_per_split); axis 0 is 'parallel' (megacore), axis 1 walks
    this split's row-blocks of the flattened (rows, 128) slab.

    y_ref   : VMEM (br, 128) predictions block (any float dtype)
    l_ref   : VMEM (br, 128) {0,1} labels block
    out_ref : VMEM (24, 128) f32 this split's partial sums (written on the last step only)
    acc_ref : VMEM (24, 128) f32 scratch: rows 0:8 sum(y), 8:16 sum(y*lab), 16:24 sum(lab)
    """
    p = pl.program_id(0)
    j = pl.program_id(1)
    g = p * bpc + j  # global row-block index

    @pl.when(j == 0)
    def _init():
        acc_ref[...] = jnp.zeros_like(acc_ref)

    def accumulate(mask_rows):
        y = y_ref[...].astype(jnp.float32)
        lab = l_ref[...].astype(jnp.float32)
        if mask_rows:
            # Only the (single) ragged last block pays this: zero the out-of-bounds rows.
            row_idx = lax.broadcasted_iota(jnp.int32, y.shape, 0)
            keep = row_idx < valid_last_rows
            y = jnp.where(keep, y, 0.0)
            lab = jnp.where(keep, lab, 0.0)
        if use_sublane:
            # Sublane-preserving partial sums: pure VALU vadds in the hot loop; all
            # cross-sublane / cross-lane reduction deferred to the wrapper epilogue.
            y3 = y.reshape(br // 8, 8, LANE)
            l3 = lab.reshape(br // 8, 8, LANE)
            acc_ref[0:8, :] += jnp.sum(y3, axis=0)
            acc_ref[8:16, :] += jnp.sum(y3 * l3, axis=0)
            acc_ref[16:24, :] += jnp.sum(l3, axis=0)
        else:
            # Tiny single-block fallback (br == rows, rows % 8 != 0).
            acc_ref[0:1, :] += jnp.sum(y, axis=0, keepdims=True)
            acc_ref[8:9, :] += jnp.sum(y * lab, axis=0, keepdims=True)
            acc_ref[16:17, :] += jnp.sum(lab, axis=0, keepdims=True)

    if needs_row_mask:
        @pl.when(g < num_blocks - 1)
        def _full_blocks():
            accumulate(False)

        @pl.when(g == num_blocks - 1)
        def _ragged_block():
            accumulate(True)
        # Blocks with g >= num_blocks (padding of the rectangular grid) are skipped.
    elif needs_block_mask:
        @pl.when(g < num_blocks)
        def _valid_blocks():
            accumulate(False)
    else:
        accumulate(False)

    @pl.when(j == bpc - 1)
    def _finalize():
        out_ref[...] = acc_ref[...]


@functools.partial(jax.jit, static_argnames=("block_rows",))
def auxiliary_loss_pallas(y_pred, labels, deta, block_rows=None):
    if block_rows is None:
        block_rows = _default_block_rows()

    y = jnp.ravel(y_pred)
    lab = jnp.ravel(labels)
    n = y.shape[0]

    rows = -(-n // LANE)
    pad = rows * LANE - n
    if pad:
        # Only copies when N is not lane-divisible; padded tail is zeros (label=0, pred=0)
        # so it contributes nothing to the sums (true N is used for neg_num below).
        y = jnp.pad(y, (0, pad))
        lab = jnp.pad(lab, (0, pad))
    y = y.reshape(rows, LANE)      # free (metadata) reshape for contiguous inputs
    lab = lab.reshape(rows, LANE)

    # Row-block size: clamp to the row count; keep dtype-aware sublane alignment when tiled.
    align = max(_sublane_multiple(y.dtype), _sublane_multiple(lab.dtype))
    br = min(int(block_rows), rows)
    if br < rows:
        br = max(align, (br // align) * align)
    num_blocks = -(-rows // br)
    valid_last = rows - (num_blocks - 1) * br
    needs_row_mask = valid_last != br
    use_sublane = (br % 8 == 0)

    # Split the block stream across two TensorCores (v7x megacore); harmless elsewhere.
    ns = 2 if num_blocks >= 2 else 1
    bpc = -(-num_blocks // ns)
    needs_block_mask = ns * bpc > num_blocks

    kernel = functools.partial(
        _aux_loss_kernel,
        br=br, bpc=bpc, num_blocks=num_blocks, valid_last_rows=valid_last,
        needs_row_mask=needs_row_mask, needs_block_mask=needs_block_mask,
        use_sublane=use_sublane)

    def in_map(p, j):
        g = p * bpc + j
        if needs_block_mask:
            g = jnp.minimum(g, num_blocks - 1)  # clamp the one padded grid step (skipped)
        return (g, 0)

    bytes_accessed = (rows * LANE * (jnp.dtype(y.dtype).itemsize + jnp.dtype(lab.dtype).itemsize)
                      + ns * ACC_ROWS * LANE * 4)
    cost = pl.CostEstimate(flops=5 * rows * LANE, transcendentals=0,
                           bytes_accessed=bytes_accessed)

    partials = pl.pallas_call(
        kernel,
        out_shape=jax.ShapeDtypeStruct((ns * ACC_ROWS, LANE), jnp.float32),
        grid=(ns, bpc),
        in_specs=[
            pl.BlockSpec((br, LANE), in_map),
            pl.BlockSpec((br, LANE), in_map),
        ],
        out_specs=pl.BlockSpec((ACC_ROWS, LANE), lambda p, j: (p, 0)),
        scratch_shapes=[pltpu.VMEM((ACC_ROWS, LANE), jnp.float32)],
        compiler_params=pltpu.CompilerParams(
            dimension_semantics=("parallel", "arbitrary")),
        cost_estimate=cost,
    )(y, lab)

    # Tiny epilogue: combine per-split per-lane partial sums and apply the analytic formula.
    stats = partials.reshape(ns, 3, 8, LANE)
    sum_y = jnp.sum(stats[:, 0])
    pos_sum = jnp.sum(stats[:, 1])
    pos_num = jnp.sum(stats[:, 2])
    neg_sum = sum_y - pos_sum

    n_f = jnp.float32(n)
    neg_num = n_f - pos_num
    deta_f = jnp.asarray(deta, jnp.float32)

    # sum over all (neg, pos) pairs of (neg - pos), done analytically.
    pair_sum = pos_num * neg_sum - neg_num * pos_sum
    valid = jnp.logical_and(pos_num > 0.0, neg_num > 0.0)
    safe_denom = jnp.where(valid, pos_num * neg_num, 1.0)
    return jnp.where(valid, deta_f * pair_sum / safe_denom, 0.0)


@jax.jit
def auxiliary_loss_reference(y_pred, labels, deta):
    """Pure-JAX reference of the intended PyTorch forward."""
    y = jnp.ravel(y_pred).astype(jnp.float32)
    lab = jnp.ravel(labels).astype(jnp.float32)
    n = jnp.float32(y.shape[0])
    pos_num = jnp.sum(lab)
    neg_num = n - pos_num
    pos_sum = jnp.sum(y * lab)
    neg_sum = jnp.sum(y) - pos_sum
    pair_sum = pos_num * neg_sum - neg_num * pos_sum
    valid = jnp.logical_and(pos_num > 0.0, neg_num > 0.0)
    safe = jnp.where(valid, pos_num * neg_num, 1.0)
    return jnp.where(valid, jnp.asarray(deta, jnp.float32) * pair_sum / safe, 0.0)


def auxiliary_loss(y_pred, labels, deta, *, min_pallas_elems=65536, block_rows=None):
    """Dispatcher: tiny inputs go to pure JAX (pallas_call fixed cost not worth it)."""
    n = int(y_pred.size)
    if n < min_pallas_elems:
        return auxiliary_loss_reference(y_pred, labels, deta)
    return auxiliary_loss_pallas(y_pred, labels, deta, block_rows=block_rows)


if __name__ == "__main__":
    key = jax.random.PRNGKey(0)
    k1, k2, k3, k4, k5, k6 = jax.random.split(key, 6)

    # args.deta_const=True -> deta = 0.2 constant.
    # (deta_const=False would be an nn.Parameter initialized to 0.2; same value here.)
    deta = jnp.float32(0.2)

    # 1) Small dense-head shape (B=2, C=4, H=W=16): single block, no masks, ns=1.
    y_pred = jax.random.normal(k1, (2, 4, 16, 16), dtype=jnp.float32)
    labels = (jax.random.uniform(k2, (2, 4, 16, 16)) > 0.7).astype(jnp.float32)
    loss = jax.block_until_ready(auxiliary_loss_pallas(y_pred, labels, deta))
    ref = auxiliary_loss_reference(y_pred, labels, deta)
    if not jnp.allclose(loss, ref, rtol=1e-5, atol=1e-5):
        raise AssertionError(f"mismatch (aligned): pallas={loss} ref={ref}")

    # 2) Two-split clean path (exercises the 'parallel' leading grid axis, no masks).
    y2 = jax.random.normal(k3, (2, 8, 64, 64), dtype=jnp.float32)
    l2 = (jax.random.uniform(k4, (2, 8, 64, 64)) > 0.5).astype(jnp.float32)
    loss2 = jax.block_until_ready(auxiliary_loss_pallas(y2, l2, deta, block_rows=128))
    ref2 = auxiliary_loss_reference(y2, l2, deta)
    if not jnp.allclose(loss2, ref2, rtol=1e-5, atol=1e-5):
        raise AssertionError(f"mismatch (two-split): pallas={loss2} ref={ref2}")

    # 3) Ragged path: lane pad + last-block row mask + one skipped (padded-grid) block.
    y3 = jax.random.normal(k5, (3, 5, 11, 13), dtype=jnp.float32)
    l3 = (jax.random.uniform(k6, (3, 5, 11, 13)) > 0.5).astype(jnp.float32)
    loss3 = jax.block_until_ready(auxiliary_loss_pallas(y3, l3, deta, block_rows=8))
    ref3 = auxiliary_loss_reference(y3, l3, deta)
    if not jnp.allclose(loss3, ref3, rtol=1e-5, atol=1e-5):
        raise AssertionError(f"mismatch (ragged): pallas={loss3} ref={ref3}")

    # 4) Dispatcher (small N -> pure-JAX fallback).
    loss4 = jax.block_until_ready(auxiliary_loss(y_pred, labels, deta))
    if not jnp.allclose(loss4, ref, rtol=1e-5, atol=1e-5):
        raise AssertionError(f"mismatch (dispatcher): {loss4} ref={ref}")

    print("KERNEL_OK")
</pallas_src>

<mosaic_0001>
module attributes {stable_mosaic.version = 11 : i64} {
  func.func @_aux_loss_kernel(%arg0: i32, %arg1: i32, %arg2: memref<16x128xf32, #tpu.memory_space<vmem>>, %arg3: memref<16x128xf32, #tpu.memory_space<vmem>>, %arg4: memref<24x128xf32, #tpu.memory_space<vmem>>, %arg5: memref<24x128xf32, #tpu.memory_space<vmem>>) attributes {dimension_semantics = [#tpu.dimension_semantics<parallel>, #tpu.dimension_semantics<arbitrary>], iteration_bounds = array<i64: 1, 1>, scalar_prefetch = 0 : i64, scratch_operands = 1 : i64, tpu.core_type = #tpu.core_type<tc>, window_params = [{transform_indices = @transform_0, window_bounds = array<i64: 16, 128>}, {transform_indices = @transform_1, window_bounds = array<i64: 16, 128>}, {transform_indices = @transform_2, window_bounds = array<i64: 24, 128>}]} {
    %c0_i32 = arith.constant 0 : i32
    %0 = arith.cmpi eq, %arg1, %c0_i32 : i32
    %1 = arith.extui %0 : i1 to i32
    %c0_i32_0 = arith.constant 0 : i32
    %2 = arith.cmpi ne, %1, %c0_i32_0 : i32
    scf.if %2 {
      %cst_18 = arith.constant 0.000000e+00 : f32
      %23 = vector.broadcast %cst_18 : f32 to vector<24x128xf32>
      %c0_19 = arith.constant 0 : index
      %c0_20 = arith.constant 0 : index
      %24 = vector.load %arg5[%c0_19, %c0_20] : memref<24x128xf32, #tpu.memory_space<vmem>>, vector<24x128xf32>
      tpu.vector_store %arg5[%c0_19, %c0_20], %23 {strides = array<i32>} : memref<24x128xf32, #tpu.memory_space<vmem>>, vector<24x128xf32>,
    } else {
    }
    %c0 = arith.constant 0 : index
    %c0_1 = arith.constant 0 : index
    %3 = vector.load %arg2[%c0, %c0_1] : memref<16x128xf32, #tpu.memory_space<vmem>>, vector<16x128xf32>
    %c0_2 = arith.constant 0 : index
    %c0_3 = arith.constant 0 : index
    %4 = vector.load %arg3[%c0_2, %c0_3] : memref<16x128xf32, #tpu.memory_space<vmem>>, vector<16x128xf32>
    %5 = vector.shape_cast %3 : vector<16x128xf32> to vector<2x8x128xf32>
    %6 = vector.shape_cast %4 : vector<16x128xf32> to vector<2x8x128xf32>
    %c0_4 = arith.constant 0 : index
    %c0_5 = arith.constant 0 : index
    %7 = vector.load %arg5[%c0_4, %c0_5] : memref<24x128xf32, #tpu.memory_space<vmem>>, vector<8x128xf32>
    %cst = arith.constant dense<0.000000e+00> : vector<8x128xf32>
    %8 = vector.multi_reduction <add>, %5, %cst [0] : vector<2x8x128xf32> to vector<8x128xf32>
    %9 = arith.addf %7, %8 : vector<8x128xf32>
    %c0_6 = arith.constant 0 : index
    %c0_7 = arith.constant 0 : index
    %10 = vector.load %arg5[%c0_6, %c0_7] : memref<24x128xf32, #tpu.memory_space<vmem>>, vector<8x128xf32>
    tpu.vector_store %arg5[%c0_6, %c0_7], %9 {strides = array<i32>} : memref<24x128xf32, #tpu.memory_space<vmem>>, vector<8x128xf32>,
    %c8 = arith.constant 8 : index
    %c0_8 = arith.constant 0 : index
    %11 = vector.load %arg5[%c8, %c0_8] : memref<24x128xf32, #tpu.memory_space<vmem>>, vector<8x128xf32>
    %12 = arith.mulf %5, %6 : vector<2x8x128xf32>
    %cst_9 = arith.constant dense<0.000000e+00> : vector<8x128xf32>
    %13 = vector.multi_reduction <add>, %12, %cst_9 [0] : vector<2x8x128xf32> to vector<8x128xf32>
    %14 = arith.addf %11, %13 : vector<8x128xf32>
    %c8_10 = arith.constant 8 : index
    %c0_11 = arith.constant 0 : index
    %15 = vector.load %arg5[%c8_10, %c0_11] : memref<24x128xf32, #tpu.memory_space<vmem>>, vector<8x128xf32>
    tpu.vector_store %arg5[%c8_10, %c0_11], %14 {strides = array<i32>} : memref<24x128xf32, #tpu.memory_space<vmem>>, vector<8x128xf32>,
    %c16 = arith.constant 16 : index
    %c0_12 = arith.constant 0 : index
    %16 = vector.load %arg5[%c16, %c0_12] : memref<24x128xf32, #tpu.memory_space<vmem>>, vector<8x128xf32>
    %cst_13 = arith.constant dense<0.000000e+00> : vector<8x128xf32>
    %17 = vector.multi_reduction <add>, %6, %cst_13 [0] : vector<2x8x128xf32> to vector<8x128xf32>
    %18 = arith.addf %16, %17 : vector<8x128xf32>
    %c16_14 = arith.constant 16 : index
    %c0_15 = arith.constant 0 : index
    %19 = vector.load %arg5[%c16_14, %c0_15] : memref<24x128xf32, #tpu.memory_space<vmem>>, vector<8x128xf32>
    tpu.vector_store %arg5[%c16_14, %c0_15], %18 {strides = array<i32>} : memref<24x128xf32, #tpu.memory_space<vmem>>, vector<8x128xf32>,
    %c0_i32_16 = arith.constant 0 : i32
    %20 = arith.cmpi eq, %arg1, %c0_i32_16 : i32
    %21 = arith.extui %20 : i1 to i32
    %c0_i32_17 = arith.constant 0 : i32
    %22 = arith.cmpi ne, %21, %c0_i32_17 : i32
    scf.if %22 {
      %c0_18 = arith.constant 0 : index
      %c0_19 = arith.constant 0 : index
      %23 = vector.load %arg5[%c0_18, %c0_19] : memref<24x128xf32, #tpu.memory_space<vmem>>, vector<24x128xf32>
      %c0_20 = arith.constant 0 : index
      %c0_21 = arith.constant 0 : index
      %24 = vector.load %arg4[%c0_20, %c0_21] : memref<24x128xf32, #tpu.memory_space<vmem>>, vector<24x128xf32>
      tpu.vector_store %arg4[%c0_20, %c0_21], %23 {strides = array<i32>} : memref<24x128xf32, #tpu.memory_space<vmem>>, vector<24x128xf32>,
    } else {
    }
    return
  }
  func.func @transform_0(%arg0: i32, %arg1: i32) -> (i32, i32) {
    %c1_i32 = arith.constant 1 : i32
    %0 = arith.muli %arg0, %c1_i32 : i32
    %1 = arith.addi %0, %arg1 : i32
    %c0_i32 = arith.constant 0 : i32
    %c0_i32_0 = arith.constant 0 : i32
    return %1, %c0_i32 : i32, i32
  }
  func.func @transform_1(%arg0: i32, %arg1: i32) -> (i32, i32) {
    %c1_i32 = arith.constant 1 : i32
    %0 = arith.muli %arg0, %c1_i32 : i32
    %1 = arith.addi %0, %arg1 : i32
    %c0_i32 = arith.constant 0 : i32
    %c0_i32_0 = arith.constant 0 : i32
    return %1, %c0_i32 : i32, i32
  }
  func.func @transform_2(%arg0: i32, %arg1: i32) -> (i32, i32) {
    %c0_i32 = arith.constant 0 : i32
    %c0_i32_0 = arith.constant 0 : i32
    return %arg0, %c0_i32 : i32, i32
  }
}

</mosaic_0001>

<llo_original>
// kernel: auxiliary_loss_pallas.1
$region0: #{auxiliary_loss_pallas.1}
  #allocation0 [shape = 'u32[]', space=smem, size = 0x4, offset = 0x4, fixed_abs, tag = 'smem constant byte address 0x4 - core index']
  #allocation1 [shape = 'u32[72,128]{1,0:T(1,128)}', space=vmem, size = 0x9000, scoped, tag = 'internal scratch']
  #allocation2 [shape = 'f32[24,128]{1,0:T(8,128)}', space=vmem, size = 0x3000, scoped, tag = 'scratch operand']
  %s0 = inlined_call_operand.vmem [shape: f32[16,128], index: 0, kind: input, shape index: {}]
  %s1 = inlined_call_operand.vmem [shape: f32[16,128], index: 1, kind: input, shape index: {}]
  %s2 = inlined_call_operand.vmem [shape: f32[24,128], index: 2, kind: output, shape index: {}]
  %s3 = sld [smem:[#allocation0]]
  $region26: #{auxiliary_loss_pallas.1} parent=0
    _
  %s5 = ssub.s32 1, %s3
  %s6 = scalar_select 0, %s5, %s3
  // Predicated region
  $region2: #{auxiliary_loss_pallas.1} parent=0 // pred_check
    _
  $region3: #{auxiliary_loss_pallas.1} parent=0 // pred_check_branch
    %8 = sbr.rel (0) target = $region5
  $region4: #{auxiliary_loss_pallas.1} parent=0 // pred_region
    %s9 = sadd.s32 0, 0
    %s10 = smul.u32 2, %s9
    %p11 = scmp.lt.s32.totalorder %s10, 1
    %s12 = scalar_select %p11, %s10, 1
    %s13 = smul.addr %s12, 8
    %s14 = scalar_lea.vmem %s0, %s13
    %s15 = sadd.s32 0, 0
    %s16 = smul.u32 2, %s15
  $region5: #{auxiliary_loss_pallas.1} parent=0 // pred_fallthru
    _
  // Predicated region
  $region6: #{auxiliary_loss_pallas.1} parent=0 // pred_check
    _
  $region7: #{auxiliary_loss_pallas.1} parent=0 // pred_check_branch
    %18 = sbr.rel (0) target = $region9
  $region8: #{auxiliary_loss_pallas.1} parent=0 // pred_region
    %s19 = sadd.s32 0, 0
    %s20 = smul.u32 2, %s19
    %p21 = scmp.lt.s32.totalorder %s20, 1
    %s22 = scalar_select %p21, %s20, 1
    %s23 = smul.addr %s22, 8
    %s24 = scalar_lea.vmem %s1, %s23
    %s25 = sadd.s32 0, 0
    %s26 = smul.u32 2, %s25
  $region9: #{auxiliary_loss_pallas.1} parent=0 // pred_fallthru
    _
  %s27 = sadd.s32 0, 0
  %s28 = smul.u32 2, %s27
  %p29 = scmp.lt.s32.totalorder %s28, 1
  %s30 = scalar_select %p29, %s28, 1
  %s31 = smul.addr %s30, 8
  %s32 = scalar_lea.vmem %s0, %s31
  %s33 = sadd.s32 0, 0
  %s34 = smul.u32 2, %s33
  %p35 = scmp.lt.s32.totalorder %s34, 1
  %s36 = scalar_select %p35, %s34, 1
  %s37 = smul.addr %s36, 8
  %s38 = scalar_lea.vmem %s1, %s37
  %s39 = sadd.s32 0, 0
  %s40 = smul.u32 2, %s39
  %p41 = scmp.lt.s32.totalorder %s40, 1
  %s42 = scalar_select %p41, %s40, 1
  %s43 = smul.addr %s42, 8
  %s44 = scalar_lea.vmem %s0, %s43
  %s45 = sadd.s32 0, 0
  %s46 = smul.u32 2, %s45
  %s47 = sadd.s32 0, 0
  %s48 = smul.u32 2, %s47
  %p49 = scmp.lt.s32.totalorder %s48, 1
  %s50 = scalar_select %p49, %s48, 1
  %s51 = smul.addr %s50, 8
  %s52 = scalar_lea.vmem %s1, %s51
  %s53 = sadd.s32 0, 0
  %s54 = smul.u32 2, %s53
  %p55 = scmp.eq.s32.totalorder 0, 0
  // Predicated region
  $region10: #{auxiliary_loss_pallas.1} parent=0 // pred_check
    %p56 = pneg %p55
  $region11: #{auxiliary_loss_pallas.1} parent=0 // pred_check_branch
    %58 = sbr.rel (%p56) target = $region13
  $region12: #{auxiliary_loss_pallas.1} parent=0 // pred_region
    %59 = vst [vmem:[#allocation2] sm:$0xff] 0.0
    %60 = vst [vmem:[#allocation2 + $0x8] sm:$0xff] 0.0
    %61 = vst [vmem:[#allocation2 + $0x10] sm:$0xff] 0.0
  $region13: #{auxiliary_loss_pallas.1} parent=0 // pred_fallthru
    _
  %v62 = vld [vmem:[%s44] sm:$0xff]
  %v63 = vld [vmem:[%s44 + $0x8] sm:$0xff]
  %v64 = vld [vmem:[%s52] sm:$0xff]
  %v65 = vld [vmem:[%s52 + $0x8] sm:$0xff]
  %v66 = vld [vmem:[#allocation2] sm:$0xff]
  %v67 = vadd.f32 %v62, %v63
  %v68 = vadd.f32 %v66, %v67
  %69 = vst [vmem:[#allocation2] sm:$0xff] %v68
  %v70 = vld [vmem:[#allocation2 + $0x8] sm:$0xff]
  %v71 = vmul.f32 %v62, %v64
  %v72 = vmul.f32 %v63, %v65
  %v73 = vadd.f32 %v71, %v72
  %v74 = vadd.f32 %v70, %v73
  %75 = vst [vmem:[#allocation2 + $0x8] sm:$0xff] %v74
  %v76 = vld [vmem:[#allocation2 + $0x10] sm:$0xff]
  %v77 = vadd.f32 %v64, %v65
  %v78 = vadd.f32 %v76, %v77
  %79 = vst [vmem:[#allocation2 + $0x10] sm:$0xff] %v78
  // Predicated region
  $region14: #{auxiliary_loss_pallas.1} parent=0 // pred_check
    %p80 = pneg %p55
  $region15: #{auxiliary_loss_pallas.1} parent=0 // pred_check_branch
    %82 = sbr.rel (%p80) target = $region17
  $region16: #{auxiliary_loss_pallas.1} parent=0 // pred_region
    %v83 = vld [vmem:[#allocation2] sm:$0xff]
    %v84 = vld [vmem:[#allocation2 + $0x8] sm:$0xff]
    %v85 = vld [vmem:[#allocation2 + $0x10] sm:$0xff]
    %86 = vst [vmem:[%s2] sm:$0xff] %v83
    %87 = vst [vmem:[%s2 + $0x8] sm:$0xff] %v84
    %88 = vst [vmem:[%s2 + $0x10] sm:$0xff] %v85
  $region17: #{auxiliary_loss_pallas.1} parent=0 // pred_fallthru
    _
  // Predicated region
  $region18: #{auxiliary_loss_pallas.1} parent=0 // pred_check
    _
  $region19: #{auxiliary_loss_pallas.1} parent=0 // pred_check_branch
    %90 = sbr.rel (0) target = $region21
  $region20: #{auxiliary_loss_pallas.1} parent=0 // pred_region
    _
  $region21: #{auxiliary_loss_pallas.1} parent=0 // pred_fallthru
    _
  // Predicated region
  $region22: #{auxiliary_loss_pallas.1} parent=0 // pred_check
    _
  $region23: #{auxiliary_loss_pallas.1} parent=0 // pred_check_branch
    %92 = sbr.rel (0) target = $region25
  $region24: #{auxiliary_loss_pallas.1} parent=0 // pred_region
    _
  $region25: #{auxiliary_loss_pallas.1} parent=0 // pred_fallthru
    _

</llo_original>
